<compile_context>
chip_gen: v7x
topology: tpu7x:2x2x1
jax: 0.10.0
libtpu: 0.0.40
codegen_flags: <defaults>
</compile_context>

<pallas_src>
import math

import jax
import jax.numpy as jnp
from jax.experimental import pallas as pl
from jax.experimental.pallas import tpu as pltpu

# ---------------------------------------------------------------------------
# model sizes (small, consistent with a toy seq2seq forward)
# ---------------------------------------------------------------------------
B = 2      # batch
S = 16     # encoder (source) sequence length
D_IN = 8   # encoder input feature dim
H = 32     # hidden size
T = 8      # decoder (target) sequence length
V = 32     # vocab size

VPAD = 128              # lane-dense output width (W_out/b_out zero-padded to this)
SQRT_H = math.sqrt(H)

# coalesced parameter-slab layout: (SLAB_ROWS, VPAD) f32
ROW_WENC = 0               # rows [0, D_IN)      : W_enc                 [D_IN, H]
ROW_BENC = D_IN            # row  D_IN           : b_enc                 [1, H]
ROW_BOUT = D_IN + 1        # row  D_IN + 1       : b_out (zero-padded)   [1, VPAD]
ROW_WOUT = 16              # rows [16, 16 + H)   : W_out * sqrt(H)       [H, VPAD] (zero-padded)
SLAB_ROWS = ROW_WOUT + H   # 48


def _seq2seq_kernel(lens_ref,            # SMEM: source lengths [B] int32
                    x_ref,               # VMEM: encoder inputs, batch-fused [B*S, D_IN]
                    d_ref,               # VMEM: decoder embeddings / sqrt(H) [B*T, H]
                    p_ref,               # VMEM: coalesced parameter slab [SLAB_ROWS, VPAD]
                    out_ref):            # VMEM: logits slab [B*T, VPAD]
    # ---- parameters (static slices of the coalesced slab; views, one DMA total) ----
    w_enc = p_ref[pl.ds(ROW_WENC, D_IN), pl.ds(0, H)]       # [D_IN, H]
    b_enc = p_ref[pl.ds(ROW_BENC, 1), pl.ds(0, H)]          # [1, H]
    b_out = p_ref[pl.ds(ROW_BOUT, 1), pl.ds(0, VPAD)]       # [1, VPAD]
    w_out = p_ref[pl.ds(ROW_WOUT, H), pl.ds(0, VPAD)]       # [H, VPAD] (pre-scaled by sqrt(H))

    # ---- encoder: whole batch in one MXU matmul ----
    enc = jnp.tanh(
        jnp.dot(x_ref[...], w_enc, preferred_element_type=jnp.float32) + b_enc
    )                                                        # [B*S, H]

    d_all = d_ref[...]                                       # [B*T, H]  (= d / sqrt(H))

    # ---- per-batch masked cross-attention (B=2, statically unrolled) ----
    pos = jax.lax.broadcasted_iota(jnp.int32, (1, S), 1)     # built once, reused for all b
    h_rows = []
    for b in range(B):
        enc_b = enc[b * S:(b + 1) * S, :]                    # [S, H] (sublane-aligned slice)
        d_b = d_all[b * T:(b + 1) * T, :]                    # [T, H]

        # contraction over H for both operands: no materialized enc_b.T
        scores = jax.lax.dot_general(
            d_b, enc_b,
            dimension_numbers=(((1,), (1,)), ((), ())),
            preferred_element_type=jnp.float32)              # [T, S] == (d @ enc^T) / sqrt(H)

        mask = pos < lens_ref[b]                             # [1, S]
        scores = jnp.where(mask, scores, jnp.float32(-1e30))

        m = jnp.max(scores, axis=-1, keepdims=True)          # [T, 1]
        p = jnp.exp(scores - m)                              # [T, S]
        denom = jnp.sum(p, axis=-1, keepdims=True)           # [T, 1]
        # fold the remaining 1/sqrt(H) into the (EUP) reciprocal: attn_s = attn / sqrt(H)
        attn_s = p * pl.reciprocal(denom * jnp.float32(SQRT_H), approx=True)
        ctx_s = jnp.dot(attn_s, enc_b,
                        preferred_element_type=jnp.float32)  # [T, H] == ctx / sqrt(H)
        h_rows.append(d_b + ctx_s)                           # == (d + ctx) / sqrt(H)

    h_all = jnp.concatenate(h_rows, axis=0)                  # [B*T, H]

    # ---- output projection: one matmul, fully lane-dense (128-wide) unmasked store ----
    out_ref[...] = (
        jnp.dot(h_all, w_out, preferred_element_type=jnp.float32) + b_out
    ).astype(out_ref.dtype)


def pack_params(params):
    """One-time parameter prep (do NOT call per forward).

    Folds the 1/sqrt(H) attention scale into the embedding table and sqrt(H) into
    W_out (mathematically identical logits), and coalesces W_enc/b_enc/W_out/b_out
    into a single lane-aligned (SLAB_ROWS, 128) f32 slab so the kernel gets exactly
    one parameter DMA.
    """
    emb_scaled = params["emb"] * jnp.float32(1.0 / SQRT_H)
    slab = jnp.zeros((SLAB_ROWS, VPAD), jnp.float32)
    slab = slab.at[ROW_WENC:ROW_WENC + D_IN, 0:H].set(params["w_enc"])
    slab = slab.at[ROW_BENC, 0:H].set(params["b_enc"][0])
    slab = slab.at[ROW_BOUT, 0:V].set(params["b_out"][0])
    slab = slab.at[ROW_WOUT:ROW_WOUT + H, 0:V].set(
        params["w_out"] * jnp.float32(SQRT_H))
    return emb_scaled, slab


def seq2seq_forward(x, src_lens, labels, emb_scaled, slab):
    """Seq2SeqModel.forward (teacher forced): returns decoder logits [B, T, V]."""
    # glue: decoder label-embedding gather stays in plain JAX
    demb = emb_scaled[labels].reshape(B * T, H)              # [B*T, H]
    x2d = x.reshape(B * S, D_IN)                             # [B*S, D_IN]

    out = pl.pallas_call(
        _seq2seq_kernel,
        out_shape=jax.ShapeDtypeStruct((B * T, VPAD), jnp.float32),
        in_specs=[
            pl.BlockSpec(memory_space=pltpu.MemorySpace.SMEM),   # src_lens
            pl.BlockSpec(memory_space=pltpu.MemorySpace.VMEM),   # x (batch-fused)
            pl.BlockSpec(memory_space=pltpu.MemorySpace.VMEM),   # decoder embeddings
            pl.BlockSpec(memory_space=pltpu.MemorySpace.VMEM),   # parameter slab
        ],
        out_specs=pl.BlockSpec(memory_space=pltpu.MemorySpace.VMEM),
        compiler_params=pltpu.CompilerParams(
            # explicit budget so the template stays valid if scaled toward v7x's
            # 64 MiB VMEM (irrelevant at these shapes: all live data << 1 MiB)
            vmem_limit_bytes=32 * 1024 * 1024,
        ),
    )(src_lens, x2d, demb, slab)

    return out[:, :V].reshape(B, T, V)


def seq2seq_reference(x, src_lens, labels, params):
    """Pure-JAX reference for correctness checking."""
    w_enc, b_enc, emb, w_out, b_out = (
        params["w_enc"], params["b_enc"], params["emb"],
        params["w_out"], params["b_out"],
    )
    enc = jnp.tanh(jnp.einsum("bsd,dh->bsh", x, w_enc) + b_enc)          # [B,S,H]
    enc_mask = jnp.arange(S)[None, :] < src_lens[:, None]                # [B,S]
    d = emb[labels]                                                      # [B,T,H]
    scores = jnp.einsum("bth,bsh->bts", d, enc) / math.sqrt(H)           # [B,T,S]
    scores = jnp.where(enc_mask[:, None, :], scores, -1e30)
    attn = jax.nn.softmax(scores, axis=-1)
    ctx = jnp.einsum("bts,bsh->bth", attn, enc)
    return jnp.einsum("bth,hv->btv", d + ctx, w_out) + b_out             # [B,T,V]


def init_params(key):
    k1, k2, k3, k4, k5 = jax.random.split(key, 5)
    return {
        "w_enc": jax.random.normal(k1, (D_IN, H), jnp.float32) * 0.1,
        "b_enc": jax.random.normal(k2, (1, H), jnp.float32) * 0.01,
        "emb":   jax.random.normal(k3, (V, H), jnp.float32) * 0.1,
        "w_out": jax.random.normal(k4, (H, V), jnp.float32) * 0.1,
        "b_out": jax.random.normal(k5, (1, V), jnp.float32) * 0.01,
    }


if __name__ == "__main__":
    key = jax.random.PRNGKey(0)
    kx, kl, kp = jax.random.split(key, 3)

    x = jax.random.normal(kx, (B, S, D_IN), jnp.float32)          # encoder inputs
    src_lens = jnp.array([S, S // 2], dtype=jnp.int32)            # variable source lengths
    labels = jax.random.randint(kl, (B, T), 0, V, dtype=jnp.int32)
    params = init_params(kp)

    emb_scaled, slab = pack_params(params)                        # one-time prep

    y = seq2seq_forward(x, src_lens, labels, emb_scaled, slab)
    y = jax.block_until_ready(y)

    y_ref = seq2seq_reference(x, src_lens, labels, params)
    assert y.shape == (B, T, V)
    # tolerance loosened slightly for the EUP approx reciprocal in the softmax
    assert jnp.allclose(y, y_ref, atol=2e-3, rtol=2e-3), "mismatch vs reference"

    # TODO(synk): `decode()` (autoregressive greedy decoding loop) is not ported;
    # only the teacher-forced forward pass is implemented.
    print("KERNEL_OK")
</pallas_src>

<mosaic_0001>
module attributes {stable_mosaic.version = 11 : i64} {
  func.func @_seq2seq_kernel(%arg0: memref<2xi32, #tpu.memory_space<smem>>, %arg1: memref<32x8xf32, #tpu.memory_space<vmem>>, %arg2: memref<16x32xf32, #tpu.memory_space<vmem>>, %arg3: memref<48x128xf32, #tpu.memory_space<vmem>>, %arg4: memref<16x128xf32, #tpu.memory_space<vmem>>) attributes {dimension_semantics = [], scalar_prefetch = 0 : i64, scratch_operands = 0 : i64, tpu.core_type = #tpu.core_type<tc>} {
    %c0 = arith.constant 0 : index
    %c0_0 = arith.constant 0 : index
    %0 = vector.load %arg3[%c0, %c0_0] : memref<48x128xf32, #tpu.memory_space<vmem>>, vector<8x32xf32>
    %c8 = arith.constant 8 : index
    %c0_1 = arith.constant 0 : index
    %1 = vector.load %arg3[%c8, %c0_1] : memref<48x128xf32, #tpu.memory_space<vmem>>, vector<1x32xf32>
    %c9 = arith.constant 9 : index
    %c0_2 = arith.constant 0 : index
    %2 = vector.load %arg3[%c9, %c0_2] : memref<48x128xf32, #tpu.memory_space<vmem>>, vector<1x128xf32>
    %c16 = arith.constant 16 : index
    %c0_3 = arith.constant 0 : index
    %3 = vector.load %arg3[%c16, %c0_3] : memref<48x128xf32, #tpu.memory_space<vmem>>, vector<32x128xf32>
    %c0_4 = arith.constant 0 : index
    %c0_5 = arith.constant 0 : index
    %4 = vector.load %arg1[%c0_4, %c0_5] : memref<32x8xf32, #tpu.memory_space<vmem>>, vector<32x8xf32>
    %cst = arith.constant dense<0.000000e+00> : vector<32x32xf32>
    %5 = tpu.matmul %4, %0, %cst {dimension_numbers = #tpu.dot_dimension_numbers<[1], [0], [0], [1], [0, 0, 1, 1], [], []>} : vector<32x8xf32>, vector<8x32xf32>, vector<32x32xf32> -> vector<32x32xf32>
    %6 = vector.broadcast %1 : vector<1x32xf32> to vector<32x32xf32>
    %7 = arith.addf %5, %6 : vector<32x32xf32>
    %8 = math.tanh %7 : vector<32x32xf32>
    %c0_6 = arith.constant 0 : index
    %c0_7 = arith.constant 0 : index
    %9 = vector.load %arg2[%c0_6, %c0_7] : memref<16x32xf32, #tpu.memory_space<vmem>>, vector<16x32xf32>
    %10 = tpu.iota {dimensions = array<i32: 1>} : vector<1x16xi32>
    %11 = vector.extract_strided_slice %8 {offsets = [0, 0], sizes = [16, 32], strides = [1, 1]} : vector<32x32xf32> to vector<16x32xf32>
    %12 = vector.extract_strided_slice %9 {offsets = [0, 0], sizes = [8, 32], strides = [1, 1]} : vector<16x32xf32> to vector<8x32xf32>
    %cst_8 = arith.constant dense<0.000000e+00> : vector<8x16xf32>
    %13 = tpu.matmul %12, %11, %cst_8 {dimension_numbers = #tpu.dot_dimension_numbers<[1], [1], [0], [0], [0, 0, 1, 0], [], []>} : vector<8x32xf32>, vector<16x32xf32>, vector<8x16xf32> -> vector<8x16xf32>
    %c0_9 = arith.constant 0 : index
    %14 = memref.load %arg0[%c0_9] : memref<2xi32, #tpu.memory_space<smem>>
    %15 = vector.broadcast %14 : i32 to vector<1x16xi32>
    %16 = arith.cmpi slt, %10, %15 : vector<1x16xi32>
    %cst_10 = arith.constant -1.000000e+30 : f32
    %17 = vector.shape_cast %16 : vector<1x16xi1> to vector<1x16xi1>
    %18 = vector.broadcast %17 : vector<1x16xi1> to vector<8x16xi1>
    %19 = vector.broadcast %cst_10 : f32 to vector<8x16xf32>
    %20 = arith.select %18, %13, %19 : vector<8x16xi1>, vector<8x16xf32>
    %cst_11 = arith.constant dense<0xFF800000> : vector<8xf32>
    %21 = vector.multi_reduction <maximumf>, %20, %cst_11 [1] : vector<8x16xf32> to vector<8xf32>
    %22 = vector.shape_cast %21 : vector<8xf32> to vector<8x1xf32>
    %23 = vector.broadcast %22 : vector<8x1xf32> to vector<8x16xf32>
    %24 = arith.subf %20, %23 : vector<8x16xf32>
    %25 = math.exp %24 : vector<8x16xf32>
    %cst_12 = arith.constant dense<0.000000e+00> : vector<8xf32>
    %26 = vector.multi_reduction <add>, %25, %cst_12 [1] : vector<8x16xf32> to vector<8xf32>
    %27 = vector.shape_cast %26 : vector<8xf32> to vector<8x1xf32>
    %cst_13 = arith.constant 5.65685415 : f32
    %28 = vector.broadcast %cst_13 : f32 to vector<8x1xf32>
    %29 = arith.mulf %27, %28 : vector<8x1xf32>
    %30 = tpu.reciprocal %29 {approx = true} : vector<8x1xf32> -> vector<8x1xf32>
    %31 = vector.broadcast %30 : vector<8x1xf32> to vector<8x16xf32>
    %32 = arith.mulf %25, %31 : vector<8x16xf32>
    %cst_14 = arith.constant dense<0.000000e+00> : vector<8x32xf32>
    %33 = tpu.matmul %32, %11, %cst_14 {dimension_numbers = #tpu.dot_dimension_numbers<[1], [0], [0], [1], [0, 0, 1, 1], [], []>} : vector<8x16xf32>, vector<16x32xf32>, vector<8x32xf32> -> vector<8x32xf32>
    %34 = arith.addf %12, %33 : vector<8x32xf32>
    %35 = vector.extract_strided_slice %8 {offsets = [16, 0], sizes = [16, 32], strides = [1, 1]} : vector<32x32xf32> to vector<16x32xf32>
    %36 = vector.extract_strided_slice %9 {offsets = [8, 0], sizes = [8, 32], strides = [1, 1]} : vector<16x32xf32> to vector<8x32xf32>
    %cst_15 = arith.constant dense<0.000000e+00> : vector<8x16xf32>
    %37 = tpu.matmul %36, %35, %cst_15 {dimension_numbers = #tpu.dot_dimension_numbers<[1], [1], [0], [0], [0, 0, 1, 0], [], []>} : vector<8x32xf32>, vector<16x32xf32>, vector<8x16xf32> -> vector<8x16xf32>
    %c1 = arith.constant 1 : index
    %38 = memref.load %arg0[%c1] : memref<2xi32, #tpu.memory_space<smem>>
    %39 = vector.broadcast %38 : i32 to vector<1x16xi32>
    %40 = arith.cmpi slt, %10, %39 : vector<1x16xi32>
    %cst_16 = arith.constant -1.000000e+30 : f32
    %41 = vector.shape_cast %40 : vector<1x16xi1> to vector<1x16xi1>
    %42 = vector.broadcast %41 : vector<1x16xi1> to vector<8x16xi1>
    %43 = vector.broadcast %cst_16 : f32 to vector<8x16xf32>
    %44 = arith.select %42, %37, %43 : vector<8x16xi1>, vector<8x16xf32>
    %cst_17 = arith.constant dense<0xFF800000> : vector<8xf32>
    %45 = vector.multi_reduction <maximumf>, %44, %cst_17 [1] : vector<8x16xf32> to vector<8xf32>
    %46 = vector.shape_cast %45 : vector<8xf32> to vector<8x1xf32>
    %47 = vector.broadcast %46 : vector<8x1xf32> to vector<8x16xf32>
    %48 = arith.subf %44, %47 : vector<8x16xf32>
    %49 = math.exp %48 : vector<8x16xf32>
    %cst_18 = arith.constant dense<0.000000e+00> : vector<8xf32>
    %50 = vector.multi_reduction <add>, %49, %cst_18 [1] : vector<8x16xf32> to vector<8xf32>
    %51 = vector.shape_cast %50 : vector<8xf32> to vector<8x1xf32>
    %cst_19 = arith.constant 5.65685415 : f32
    %52 = vector.broadcast %cst_19 : f32 to vector<8x1xf32>
    %53 = arith.mulf %51, %52 : vector<8x1xf32>
    %54 = tpu.reciprocal %53 {approx = true} : vector<8x1xf32> -> vector<8x1xf32>
    %55 = vector.broadcast %54 : vector<8x1xf32> to vector<8x16xf32>
    %56 = arith.mulf %49, %55 : vector<8x16xf32>
    %cst_20 = arith.constant dense<0.000000e+00> : vector<8x32xf32>
    %57 = tpu.matmul %56, %35, %cst_20 {dimension_numbers = #tpu.dot_dimension_numbers<[1], [0], [0], [1], [0, 0, 1, 1], [], []>} : vector<8x16xf32>, vector<16x32xf32>, vector<8x32xf32> -> vector<8x32xf32>
    %58 = arith.addf %36, %57 : vector<8x32xf32>
    %59 = tpu.concatenate %34, %58 in 0 : vector<8x32xf32>, vector<8x32xf32> -> vector<16x32xf32>
    %cst_21 = arith.constant dense<0.000000e+00> : vector<16x128xf32>
    %60 = tpu.matmul %59, %3, %cst_21 {dimension_numbers = #tpu.dot_dimension_numbers<[1], [0], [0], [1], [0, 0, 1, 1], [], []>} : vector<16x32xf32>, vector<32x128xf32>, vector<16x128xf32> -> vector<16x128xf32>
    %61 = vector.broadcast %2 : vector<1x128xf32> to vector<16x128xf32>
    %62 = arith.addf %60, %61 : vector<16x128xf32>
    %c0_22 = arith.constant 0 : index
    %c0_23 = arith.constant 0 : index
    %63 = vector.load %arg4[%c0_22, %c0_23] : memref<16x128xf32, #tpu.memory_space<vmem>>, vector<16x128xf32>
    tpu.vector_store %arg4[%c0_22, %c0_23], %62 {strides = array<i32>} : memref<16x128xf32, #tpu.memory_space<vmem>>, vector<16x128xf32>,
    return
  }
}

</mosaic_0001>

<llo_original>
// kernel: tpu_custom_call.1
$region0: #{tpu_custom_call.1}
  #allocation0 [shape = 'u32[]', space=smem, size = 0x4, offset = 0x4, fixed_abs, tag = 'smem constant byte address 0x4 - core index']
  #allocation1 [shape = 'u32[144,128]{1,0:T(1,128)}', space=vmem, size = 0x12000, scoped, tag = 'internal scratch']
  %s0 = inlined_call_operand.vmem [shape: s32[2], index: 0, kind: input, shape index: {}]
  %s1 = inlined_call_operand.vmem [shape: f32[32,8], index: 1, kind: input, shape index: {}]
  %s2 = inlined_call_operand.hbm [shape: f32[16,32], index: 2, kind: input, shape index: {}]
  %s3 = inlined_call_operand.vmem [shape: f32[48,128], index: 3, kind: input, shape index: {}]
  %s4 = inlined_call_operand.hbm [shape: f32[16,128], index: 4, kind: output, shape index: {}]
  %s5 = sld [smem:[#allocation0]]
  $region34: #{tpu_custom_call.1} parent=0
    _
  %s7 = ssub.s32 1, %s5
  %s8 = scalar_select 0, %s7, %s5
  $region1: #{tpu_custom_call.1} parent=0
    #allocation2 [shape = 'u8[512]{0}', space=smem, size = 0x200, scoped, tag = 'input window, operand 0, single buffered']
    #allocation3 [shape = 's32[1]{0}', space=sflag, size = 0x4, scoped, tag = 'scoped memory for tpu_custom_call.1']
    #allocation4 [shape = 's32[1]{0}', space=sflag, size = 0x4, scoped, tag = 'scoped memory for tpu_custom_call.1']
    #allocation5 [shape = 's32[1]{0}', space=sflag, size = 0x4, scoped, tag = 'scoped memory for tpu_custom_call.1']
    #allocation6 [shape = 'u8[8192]{0}', space=vmem, size = 0x2000, scoped, tag = 'input window, operand 2, single buffered']
    #allocation7 [shape = 'u8[8192]{0}', space=vmem, size = 0x2000, scoped, tag = 'output window, operand 0, single buffered']
    %9 = vsyncpa [#allocation5], 0
    %10 = vsyncpa [#allocation3], 0
    %11 = vsyncpa [#allocation4], 0
    // Predicated region
    $region2: #{tpu_custom_call.1} parent=1 // pred_check
      _
    $region3: #{tpu_custom_call.1} parent=1 // pred_check_branch
      %13 = sbr.rel (0) target = $region5
    $region4: #{tpu_custom_call.1} parent=1 // pred_region
      %s15 = ssub.s32 16, 16
      %16 = vsyncadd [#allocation5], %s15
      %s18 = sshll.u32 %s0, 4
      %s19 = int_to_ptr.vmem [resolvable:$true] %s18
      %21 = dma.vmem_to_smem %s19, 16, [#allocation2], [#allocation5]
    $region5: #{tpu_custom_call.1} parent=1 // pred_fallthru
      _
    // Predicated region
    $region6: #{tpu_custom_call.1} parent=1 // pred_check
      _
    $region7: #{tpu_custom_call.1} parent=1 // pred_check_branch
      %23 = sbr.rel (0) target = $region9
    $region8: #{tpu_custom_call.1} parent=1 // pred_region
      _
    $region9: #{tpu_custom_call.1} parent=1 // pred_fallthru
      _
    // Predicated region
    $region10: #{tpu_custom_call.1} parent=1 // pred_check
      _
    $region11: #{tpu_custom_call.1} parent=1 // pred_check_branch
      %25 = sbr.rel (0) target = $region13
    $region12: #{tpu_custom_call.1} parent=1 // pred_region
      %s27 = ssub.s32 256, 256
      %28 = vsyncadd [#allocation3], %s27
      %s29 = sshll.u32 [#allocation6], 4
      %s30 = int_to_ptr.vmem [resolvable:$true] %s29
      %35 = dma.hbm_to_vmem [thread:$0]  %s2, 256, %s30, [#allocation3], 128, 128, 8
    $region13: #{tpu_custom_call.1} parent=1 // pred_fallthru
      _
    // Predicated region
    $region14: #{tpu_custom_call.1} parent=1 // pred_check
      _
    $region15: #{tpu_custom_call.1} parent=1 // pred_check_branch
      %37 = sbr.rel (0) target = $region17
    $region16: #{tpu_custom_call.1} parent=1 // pred_region
      _
    $region17: #{tpu_custom_call.1} parent=1 // pred_fallthru
      _
    // Predicated region
    $region18: #{tpu_custom_call.1} parent=1 // pred_check
      _
    $region19: #{tpu_custom_call.1} parent=1 // pred_check_branch
      %39 = sbr.rel (0) target = $region21
    $region20: #{tpu_custom_call.1} parent=1 // pred_region
      %40 = dma.done [#allocation5], 16
    $region21: #{tpu_custom_call.1} parent=1 // pred_fallthru
      _
    // Predicated region
    $region22: #{tpu_custom_call.1} parent=1 // pred_check
      _
    $region23: #{tpu_custom_call.1} parent=1 // pred_check_branch
      %42 = sbr.rel (0) target = $region25
    $region24: #{tpu_custom_call.1} parent=1 // pred_region
      %43 = dma.done [#allocation3], 256
    $region25: #{tpu_custom_call.1} parent=1 // pred_fallthru
      _
    %44 = sfence
    %v45 = vld [vmem:[%s3] sm:$0xff]
    %v46 = vld [vmem:[%s3 + $0x8] sm:$0x1]
    %v47 = vld [vmem:[%s3 + $0x9] sm:$0x1]
    %v48 = vld [vmem:[%s3 + $0x10] sm:$0xff]
    %v49 = vld [vmem:[%s3 + $0x18] sm:$0xff]
    %v50 = vld [vmem:[%s3 + $0x20] sm:$0xff]
    %v51 = vld [vmem:[%s3 + $0x28] sm:$0xff]
    %v52 = vld [vmem:[%s1] sm:$0xff]
    %v53 = vld [vmem:[%s1 + $0x8] sm:$0xff]
    %v54 = vld [vmem:[%s1 + $0x10] sm:$0xff]
    %v55 = vld [vmem:[%s1 + $0x18] sm:$0xff]
    %v56 = vlaneseq
    %v57 = vshrl.u32 %v56, 7
    %v58 = vsub.s32 0, %v57
    %v59 = vrot.slane %v46, %v58
    %vm60 = vcmask 64512
    %v62 = vsel %vm60, %v52, 0
    %v65 = vsel %vm60, %v53, 0
    %v68 = vsel %vm60, %v54, 0
    %v71 = vsel %vm60, %v55, 0
    %73 = vmatprep.subr.mxu0 0.0
    %74 = vmatpush1.msra.mxu0 %v45
    %75 = vmatprep.subr.mxu0 0.0
    %76 = vmatpush1.msra.mxu0 0.0
    %77 = vmatprep.subr.mxu0 0.0
    %78 = vmatpush1.msra.mxu0 0.0
    %79 = vmatprep.subr.mxu0 0.0
    %80 = vmatpush1.msra.mxu0 0.0
    %81 = vmatprep.subr.mxu0 0.0
    %82 = vmatpush1.msra.mxu0 0.0
    %83 = vmatprep.subr.mxu0 0.0
    %84 = vmatpush1.msra.mxu0 0.0
    %85 = vmatprep.subr.mxu0 0.0
    %86 = vmatpush1.msra.mxu0 0.0
    %87 = vmatprep.subr.mxu0 0.0
    %88 = vmatpush1.msra.mxu0 0.0
    %89 = vmatprep.subr.mxu0 0.0
    %90 = vmatpush1.msra.mxu0 0.0
    %91 = vmatprep.subr.mxu0 0.0
    %92 = vmatpush1.msra.mxu0 0.0
    %93 = vmatprep.subr.mxu0 0.0
    %94 = vmatpush1.msra.mxu0 0.0
    %95 = vmatprep.subr.mxu0 0.0
    %96 = vmatpush1.msra.mxu0 0.0
    %97 = vmatprep.subr.mxu0 0.0
    %98 = vmatpush1.msra.mxu0 0.0
    %99 = vmatprep.subr.mxu0 0.0
    %100 = vmatpush1.msra.mxu0 0.0
    %101 = vmatprep.subr.mxu0 0.0
    %102 = vmatpush1.msra.mxu0 0.0
    %103 = vmatprep.subr.mxu0 0.0
    %104 = vmatpush1.msra.mxu0 0.0
    %105 = vmatprep.subr.mxu0 0.0
    %106 = vmatpush1.msra.mxu0 0.0
    %107 = vmatprep.subr.mxu0 0.0
    %108 = vmatpush1.msra.mxu0 0.0
    %109 = vmatprep.subr.mxu0 0.0
    %110 = vmatpush1.msra.mxu0 0.0
    %111 = vmatprep.subr.mxu0 0.0
    %112 = vmatpush1.msra.mxu0 0.0
    %113 = vmatprep.subr.mxu0 0.0
    %114 = vmatpush1.msra.mxu0 0.0
    %115 = vmatprep.subr.mxu0 0.0
    %116 = vmatpush1.msra.mxu0 0.0
    %117 = vmatprep.subr.mxu0 0.0
    %118 = vmatpush1.msra.mxu0 0.0
    %119 = vmatprep.subr.mxu0 0.0
    %120 = vmatpush1.msra.mxu0 0.0
    %121 = vmatprep.subr.mxu0 0.0
    %122 = vmatpush1.msra.mxu0 0.0
    %123 = vmatprep.subr.mxu0 0.0
    %124 = vmatpush1.msra.mxu0 0.0
    %125 = vmatprep.subr.mxu0 0.0
    %126 = vmatpush1.msra.mxu0 0.0
    %127 = vmatprep.subr.mxu0 0.0
    %128 = vmatpush1.msra.mxu0 0.0
    %129 = vmatprep.subr.mxu0 0.0
    %130 = vmatpush1.msra.mxu0 0.0
    %131 = vmatprep.subr.mxu0 0.0
    %132 = vmatpush1.msra.mxu0 0.0
    %133 = vmatprep.subr.mxu0 0.0
    %134 = vmatpush1.msra.mxu0 0.0
    %135 = vmatprep.subr.mxu0 0.0
    %136 = vmatpush1.msra.mxu0 0.0
    %137 = vmatprep.mubr.f32.mxu0 0.0
    %138 = vmatmul.mubr.f32.gmra.mrb[0].mxu0 %v62
    %v139 = vpop.f32.mrb[0].mxu0
    %v140 = vadd.f32 %v59, %v139
    %v141 = vpop.f32.mrb[0].mxu0
    %142 = vmatprep.mubr.f32.mxu0 0.0
    %143 = vmatmul.mubr.f32.gmra.mrb[0].mxu0 %v65
    %v144 = vpop.f32.mrb[0].mxu0
    %v145 = vadd.f32 %v59, %v144
    %v146 = vpop.f32.mrb[0].mxu0
    %147 = vmatprep.mubr.f32.mxu0 0.0
    %148 = vmatmul.mubr.f32.gmra.mrb[0].mxu0 %v68
    %v149 = vpop.f32.mrb[0].mxu0
    %v150 = vadd.f32 %v59, %v149
    %v151 = vpop.f32.mrb[0].mxu0
    %152 = vmatprep.mubr.f32.mxu0 0.0
    %153 = vmatmul.mubr.f32.gmra.mrb[0].mxu0 %v71
    %v154 = vpop.f32.mrb[0].mxu0
    %v155 = vadd.f32 %v59, %v154
    %v156 = vpop.f32.mrb[0].mxu0
    %157 = vdwg.mxu0
    %v158 = vtanh.pop %v140
    %v159 = vtanh.pop %v145
    %v160 = vtanh.pop %v150
    %v161 = vtanh.pop %v155
    %v162 = vld [vmem:[#allocation6] sm:$0xff]
    %v163 = vld [vmem:[#allocation6 + $0x8] sm:$0xff]
    %v164 = vlaneseq
    %v165 = vand.u32 %v164, 127
    %vm166 = vcmask 261120
    %v168 = vsel %vm166, %v162, 0
    %v171 = vsel %vm166, %v158, 0
    %v174 = vsel %vm166, %v159, 0
    %176 = vmatprep.subr.mxu0 0.0
    %177 = vmatpush1.xpose.msra.mxu0 %v171
    %178 = vmatprep.subr.mxu0 0.0
    %179 = vmatpush1.xpose.msra.mxu0 %v174
    %180 = vmatprep.subr.mxu0 0.0
    %181 = vmatpush1.xpose.msra.mxu0 0.0
    %182 = vmatprep.subr.mxu0 0.0
    %183 = vmatpush1.xpose.msra.mxu0 0.0
    %184 = vmatprep.subr.mxu0 0.0
    %185 = vmatpush1.xpose.msra.mxu0 0.0
    %186 = vmatprep.subr.mxu0 0.0
    %187 = vmatpush1.xpose.msra.mxu0 0.0
    %188 = vmatprep.subr.mxu0 0.0
    %189 = vmatpush1.xpose.msra.mxu0 0.0
    %190 = vmatprep.subr.mxu0 0.0
    %191 = vmatpush1.xpose.msra.mxu0 0.0
    %192 = vmatprep.subr.mxu0 0.0
    %193 = vmatpush1.xpose.msra.mxu0 0.0
    %194 = vmatprep.subr.mxu0 0.0
    %195 = vmatpush1.xpose.msra.mxu0 0.0
    %196 = vmatprep.subr.mxu0 0.0
    %197 = vmatpush1.xpose.msra.mxu0 0.0
    %198 = vmatprep.subr.mxu0 0.0
    %199 = vmatpush1.xpose.msra.mxu0 0.0
    %200 = vmatprep.subr.mxu0 0.0
    %201 = vmatpush1.xpose.msra.mxu0 0.0
    %202 = vmatprep.subr.mxu0 0.0
    %203 = vmatpush1.xpose.msra.mxu0 0.0
    %204 = vmatprep.subr.mxu0 0.0
    %205 = vmatpush1.xpose.msra.mxu0 0.0
    %206 = vmatprep.subr.mxu0 0.0
    %207 = vmatpush1.xpose.msra.mxu0 0.0
    %208 = vmatprep.subr.mxu0 0.0
    %209 = vmatpush1.xpose.msra.mxu0 0.0
    %210 = vmatprep.subr.mxu0 0.0
    %211 = vmatpush1.xpose.msra.mxu0 0.0
    %212 = vmatprep.subr.mxu0 0.0
    %213 = vmatpush1.xpose.msra.mxu0 0.0
    %214 = vmatprep.subr.mxu0 0.0
    %215 = vmatpush1.xpose.msra.mxu0 0.0
    %216 = vmatprep.subr.mxu0 0.0
    %217 = vmatpush1.xpose.msra.mxu0 0.0
    %218 = vmatprep.subr.mxu0 0.0
    %219 = vmatpush1.xpose.msra.mxu0 0.0
    %220 = vmatprep.subr.mxu0 0.0
    %221 = vmatpush1.xpose.msra.mxu0 0.0
    %222 = vmatprep.subr.mxu0 0.0
    %223 = vmatpush1.xpose.msra.mxu0 0.0
    %224 = vmatprep.subr.mxu0 0.0
    %225 = vmatpush1.xpose.msra.mxu0 0.0
    %226 = vmatprep.subr.mxu0 0.0
    %227 = vmatpush1.xpose.msra.mxu0 0.0
    %228 = vmatprep.subr.mxu0 0.0
    %229 = vmatpush1.xpose.msra.mxu0 0.0
    %230 = vmatprep.subr.mxu0 0.0
    %231 = vmatpush1.xpose.msra.mxu0 0.0
    %232 = vmatprep.subr.mxu0 0.0
    %233 = vmatpush1.xpose.msra.mxu0 0.0
    %234 = vmatprep.subr.mxu0 0.0
    %235 = vmatpush1.xpose.msra.mxu0 0.0
    %236 = vmatprep.subr.mxu0 0.0
    %237 = vmatpush1.xpose.msra.mxu0 0.0
    %238 = vmatprep.subr.mxu0 0.0
    %239 = vmatpush1.xpose.msra.mxu0 0.0
    %240 = vmatprep.mubr.f32.mxu0 0.0
    %241 = vmatmul.mubr.f32.gmra.mrb[0].mxu0 %v168
    %v242 = vpop.f32.mrb[0].mxu0
    %v243 = vadd.f32 0.0, %v242
    %v244 = vpop.f32.mrb[0].mxu0
    %245 = vdwg.mxu0
    %s246 = sld [smem:[#allocation2]]
    %v247 = vstv %s246
    %vm248 = vcmp.lt.s32.totalorder %v165, %v247
    %v249 = vsel %vm248, 1, 0
    %vm250 = vcmp.eq.s32.totalorder %v249, 1
    %v251 = vsel %vm250, %v243, -1e+30
    %vm252 = vcmask 130048
    %v253 = vsel %vm252, %v251, -inf
    %254 = vmax.xlane.f32.xlu0 %v253
    %v255 = vpop.xlane.xlu0 %254
    %v256 = vsub.f32 %v251, %v255
    %v257 = vmul.f32 %v256, 1.442695
    %v258 = vpow.pop %v257
    %v259 = vsel %vm252, %v258, 0.0
    %260 = vadd.xlane.f32.xlu0 %v259
    %v261 = vpop.xlane.xlu0 %260
    %v262 = vmul.f32 %v261, 5.656854
    %v263 = vrcp.pop %v262
    %v264 = vmul.f32 %v258, %v263
    %v266 = vsel %vm252, %v264, 0
    %268 = vmatprep.subr.mxu0 0.0
    %269 = vmatpush1.msra.mxu0 %v158
    %270 = vmatprep.subr.mxu0 0.0
    %271 = vmatpush1.msra.mxu0 %v159
    %272 = vmatprep.subr.mxu0 0.0
    %273 = vmatpush1.msra.mxu0 0.0
    %274 = vmatprep.subr.mxu0 0.0
    %275 = vmatpush1.msra.mxu0 0.0
    %276 = vmatprep.subr.mxu0 0.0
    %277 = vmatpush1.msra.mxu0 0.0
    %278 = vmatprep.subr.mxu0 0.0
    %279 = vmatpush1.msra.mxu0 0.0
    %280 = vmatprep.subr.mxu0 0.0
    %281 = vmatpush1.msra.mxu0 0.0
    %282 = vmatprep.subr.mxu0 0.0
    %283 = vmatpush1.msra.mxu0 0.0
    %284 = vmatprep.subr.mxu0 0.0
    %285 = vmatpush1.msra.mxu0 0.0
    %286 = vmatprep.subr.mxu0 0.0
    %287 = vmatpush1.msra.mxu0 0.0
    %288 = vmatprep.subr.mxu0 0.0
    %289 = vmatpush1.msra.mxu0 0.0
    %290 = vmatprep.subr.mxu0 0.0
    %291 = vmatpush1.msra.mxu0 0.0
    %292 = vmatprep.subr.mxu0 0.0
    %293 = vmatpush1.msra.mxu0 0.0
    %294 = vmatprep.subr.mxu0 0.0
    %295 = vmatpush1.msra.mxu0 0.0
    %296 = vmatprep.subr.mxu0 0.0
    %297 = vmatpush1.msra.mxu0 0.0
    %298 = vmatprep.subr.mxu0 0.0
    %299 = vmatpush1.msra.mxu0 0.0
    %300 = vmatprep.subr.mxu0 0.0
    %301 = vmatpush1.msra.mxu0 0.0
    %302 = vmatprep.subr.mxu0 0.0
    %303 = vmatpush1.msra.mxu0 0.0
    %304 = vmatprep.subr.mxu0 0.0
    %305 = vmatpush1.msra.mxu0 0.0
    %306 = vmatprep.subr.mxu0 0.0
    %307 = vmatpush1.msra.mxu0 0.0
    %308 = vmatprep.subr.mxu0 0.0
    %309 = vmatpush1.msra.mxu0 0.0
    %310 = vmatprep.subr.mxu0 0.0
    %311 = vmatpush1.msra.mxu0 0.0
    %312 = vmatprep.subr.mxu0 0.0
    %313 = vmatpush1.msra.mxu0 0.0
    %314 = vmatprep.subr.mxu0 0.0
    %315 = vmatpush1.msra.mxu0 0.0
    %316 = vmatprep.subr.mxu0 0.0
    %317 = vmatpush1.msra.mxu0 0.0
    %318 = vmatprep.subr.mxu0 0.0
    %319 = vmatpush1.msra.mxu0 0.0
    %320 = vmatprep.subr.mxu0 0.0
    %321 = vmatpush1.msra.mxu0 0.0
    %322 = vmatprep.subr.mxu0 0.0
    %323 = vmatpush1.msra.mxu0 0.0
    %324 = vmatprep.subr.mxu0 0.0
    %325 = vmatpush1.msra.mxu0 0.0
    %326 = vmatprep.subr.mxu0 0.0
    %327 = vmatpush1.msra.mxu0 0.0
    %328 = vmatprep.subr.mxu0 0.0
    %329 = vmatpush1.msra.mxu0 0.0
    %330 = vmatprep.subr.mxu0 0.0
    %331 = vmatpush1.msra.mxu0 0.0
    %332 = vmatprep.mubr.f32.mxu0 0.0
    %333 = vmatmul.mubr.f32.gmra.mrb[0].mxu0 %v266
    %v334 = vpop.f32.mrb[0].mxu0
    %v335 = vadd.f32 0.0, %v334
    %v336 = vpop.f32.mrb[0].mxu0
    %337 = vdwg.mxu0
    %v338 = vadd.f32 %v162, %v335
    %v340 = vsel %vm166, %v163, 0
    %v343 = vsel %vm166, %v160, 0
    %v346 = vsel %vm166, %v161, 0
    %348 = vmatprep.subr.mxu0 0.0
    %349 = vmatpush1.xpose.msra.mxu0 %v343
    %350 = vmatprep.subr.mxu0 0.0
    %351 = vmatpush1.xpose.msra.mxu0 %v346
    %352 = vmatprep.subr.mxu0 0.0
    %353 = vmatpush1.xpose.msra.mxu0 0.0
    %354 = vmatprep.subr.mxu0 0.0
    %355 = vmatpush1.xpose.msra.mxu0 0.0
    %356 = vmatprep.subr.mxu0 0.0
    %357 = vmatpush1.xpose.msra.mxu0 0.0
    %358 = vmatprep.subr.mxu0 0.0
    %359 = vmatpush1.xpose.msra.mxu0 0.0
    %360 = vmatprep.subr.mxu0 0.0
    %361 = vmatpush1.xpose.msra.mxu0 0.0
    %362 = vmatprep.subr.mxu0 0.0
    %363 = vmatpush1.xpose.msra.mxu0 0.0
    %364 = vmatprep.subr.mxu0 0.0
    %365 = vmatpush1.xpose.msra.mxu0 0.0
    %366 = vmatprep.subr.mxu0 0.0
    %367 = vmatpush1.xpose.msra.mxu0 0.0
    %368 = vmatprep.subr.mxu0 0.0
    %369 = vmatpush1.xpose.msra.mxu0 0.0
    %370 = vmatprep.subr.mxu0 0.0
    %371 = vmatpush1.xpose.msra.mxu0 0.0
    %372 = vmatprep.subr.mxu0 0.0
    %373 = vmatpush1.xpose.msra.mxu0 0.0
    %374 = vmatprep.subr.mxu0 0.0
    %375 = vmatpush1.xpose.msra.mxu0 0.0
    %376 = vmatprep.subr.mxu0 0.0
    %377 = vmatpush1.xpose.msra.mxu0 0.0
    %378 = vmatprep.subr.mxu0 0.0
    %379 = vmatpush1.xpose.msra.mxu0 0.0
    %380 = vmatprep.subr.mxu0 0.0
    %381 = vmatpush1.xpose.msra.mxu0 0.0
    %382 = vmatprep.subr.mxu0 0.0
    %383 = vmatpush1.xpose.msra.mxu0 0.0
    %384 = vmatprep.subr.mxu0 0.0
    %385 = vmatpush1.xpose.msra.mxu0 0.0
    %386 = vmatprep.subr.mxu0 0.0
    %387 = vmatpush1.xpose.msra.mxu0 0.0
    %388 = vmatprep.subr.mxu0 0.0
    %389 = vmatpush1.xpose.msra.mxu0 0.0
    %390 = vmatprep.subr.mxu0 0.0
    %391 = vmatpush1.xpose.msra.mxu0 0.0
    %392 = vmatprep.subr.mxu0 0.0
    %393 = vmatpush1.xpose.msra.mxu0 0.0
    %394 = vmatprep.subr.mxu0 0.0
    %395 = vmatpush1.xpose.msra.mxu0 0.0
    %396 = vmatprep.subr.mxu0 0.0
    %397 = vmatpush1.xpose.msra.mxu0 0.0
    %398 = vmatprep.subr.mxu0 0.0
    %399 = vmatpush1.xpose.msra.mxu0 0.0
    %400 = vmatprep.subr.mxu0 0.0
    %401 = vmatpush1.xpose.msra.mxu0 0.0
    %402 = vmatprep.subr.mxu0 0.0
    %403 = vmatpush1.xpose.msra.mxu0 0.0
    %404 = vmatprep.subr.mxu0 0.0
    %405 = vmatpush1.xpose.msra.mxu0 0.0
    %406 = vmatprep.subr.mxu0 0.0
    %407 = vmatpush1.xpose.msra.mxu0 0.0
    %408 = vmatprep.subr.mxu0 0.0
    %409 = vmatpush1.xpose.msra.mxu0 0.0
    %410 = vmatprep.subr.mxu0 0.0
    %411 = vmatpush1.xpose.msra.mxu0 0.0
    %412 = vmatprep.mubr.f32.mxu0 0.0
    %413 = vmatmul.mubr.f32.gmra.mrb[0].mxu0 %v340
    %v414 = vpop.f32.mrb[0].mxu0
    %v415 = vadd.f32 0.0, %v414
    %v416 = vpop.f32.mrb[0].mxu0
    %417 = vdwg.mxu0
    %s418 = sld [smem:[#allocation2 + $0x1]]
    %v419 = vstv %s418
    %vm420 = vcmp.lt.s32.totalorder %v165, %v419
    %v421 = vsel %vm420, 1, 0
    %vm422 = vcmp.eq.s32.totalorder %v421, 1
    %v423 = vsel %vm422, %v415, -1e+30
    %v424 = vsel %vm252, %v423, -inf
    %425 = vmax.xlane.f32.xlu0 %v424
    %v426 = vpop.xlane.xlu0 %425
    %v427 = vsub.f32 %v423, %v426
    %v428 = vmul.f32 %v427, 1.442695
    %v429 = vpow.pop %v428
    %v430 = vsel %vm252, %v429, 0.0
    %431 = vadd.xlane.f32.xlu0 %v430
    %v432 = vpop.xlane.xlu0 %431
    %v433 = vmul.f32 %v432, 5.656854
    %v434 = vrcp.pop %v433
    %v435 = vmul.f32 %v429, %v434
    %v437 = vsel %vm252, %v435, 0
    %439 = vmatprep.subr.mxu0 0.0
    %440 = vmatpush1.msra.mxu0 %v160
    %441 = vmatprep.subr.mxu0 0.0
    %442 = vmatpush1.msra.mxu0 %v161
    %443 = vmatprep.subr.mxu0 0.0
    %444 = vmatpush1.msra.mxu0 0.0
    %445 = vmatprep.subr.mxu0 0.0
    %446 = vmatpush1.msra.mxu0 0.0
    %447 = vmatprep.subr.mxu0 0.0
    %448 = vmatpush1.msra.mxu0 0.0
    %449 = vmatprep.subr.mxu0 0.0
    %450 = vmatpush1.msra.mxu0 0.0
    %451 = vmatprep.subr.mxu0 0.0
    %452 = vmatpush1.msra.mxu0 0.0
    %453 = vmatprep.subr.mxu0 0.0
    %454 = vmatpush1.msra.mxu0 0.0
    %455 = vmatprep.subr.mxu0 0.0
    %456 = vmatpush1.msra.mxu0 0.0
    %457 = vmatprep.subr.mxu0 0.0
    %458 = vmatpush1.msra.mxu0 0.0
    %459 = vmatprep.subr.mxu0 0.0
    %460 = vmatpush1.msra.mxu0 0.0
    %461 = vmatprep.subr.mxu0 0.0
    %462 = vmatpush1.msra.mxu0 0.0
    %463 = vmatprep.subr.mxu0 0.0
    %464 = vmatpush1.msra.mxu0 0.0
    %465 = vmatprep.subr.mxu0 0.0
    %466 = vmatpush1.msra.mxu0 0.0
    %467 = vmatprep.subr.mxu0 0.0
    %468 = vmatpush1.msra.mxu0 0.0
    %469 = vmatprep.subr.mxu0 0.0
    %470 = vmatpush1.msra.mxu0 0.0
    %471 = vmatprep.subr.mxu0 0.0
    %472 = vmatpush1.msra.mxu0 0.0
    %473 = vmatprep.subr.mxu0 0.0
    %474 = vmatpush1.msra.mxu0 0.0
    %475 = vmatprep.subr.mxu0 0.0
    %476 = vmatpush1.msra.mxu0 0.0
    %477 = vmatprep.subr.mxu0 0.0
    %478 = vmatpush1.msra.mxu0 0.0
    %479 = vmatprep.subr.mxu0 0.0
    %480 = vmatpush1.msra.mxu0 0.0
    %481 = vmatprep.subr.mxu0 0.0
    %482 = vmatpush1.msra.mxu0 0.0
    %483 = vmatprep.subr.mxu0 0.0
    %484 = vmatpush1.msra.mxu0 0.0
    %485 = vmatprep.subr.mxu0 0.0
    %486 = vmatpush1.msra.mxu0 0.0
    %487 = vmatprep.subr.mxu0 0.0
    %488 = vmatpush1.msra.mxu0 0.0
    %489 = vmatprep.subr.mxu0 0.0
    %490 = vmatpush1.msra.mxu0 0.0
    %491 = vmatprep.subr.mxu0 0.0
    %492 = vmatpush1.msra.mxu0 0.0
    %493 = vmatprep.subr.mxu0 0.0
    %494 = vmatpush1.msra.mxu0 0.0
    %495 = vmatprep.subr.mxu0 0.0
    %496 = vmatpush1.msra.mxu0 0.0
    %497 = vmatprep.subr.mxu0 0.0
    %498 = vmatpush1.msra.mxu0 0.0
    %499 = vmatprep.subr.mxu0 0.0
    %500 = vmatpush1.msra.mxu0 0.0
    %501 = vmatprep.subr.mxu0 0.0
    %502 = vmatpush1.msra.mxu0 0.0
    %503 = vmatprep.mubr.f32.mxu0 0.0
    %504 = vmatmul.mubr.f32.gmra.mrb[0].mxu0 %v437
    %v505 = vpop.f32.mrb[0].mxu0
    %v506 = vadd.f32 0.0, %v505
    %v507 = vpop.f32.mrb[0].mxu0
    %508 = vdwg.mxu0
    %v509 = vadd.f32 %v163, %v506
    %v510 = vlaneseq
    %v511 = vshrl.u32 %v510, 7
    %v512 = vsub.s32 0, %v511
    %v513 = vrot.slane %v47, %v512
    %v515 = vsel %vm166, %v338, 0
    %v518 = vsel %vm166, %v509, 0
    %520 = vmatprep.subr.mxu0 0.0
    %521 = vmatpush1.msra.mxu0 %v48
    %522 = vmatprep.subr.mxu0 0.0
    %523 = vmatpush1.msra.mxu0 %v49
    %524 = vmatprep.subr.mxu0 0.0
    %525 = vmatpush1.msra.mxu0 %v50
    %526 = vmatprep.subr.mxu0 0.0
    %527 = vmatpush1.msra.mxu0 %v51
    %528 = vmatprep.subr.mxu0 0.0
    %529 = vmatpush1.msra.mxu0 0.0
    %530 = vmatprep.subr.mxu0 0.0
    %531 = vmatpush1.msra.mxu0 0.0
    %532 = vmatprep.subr.mxu0 0.0
    %533 = vmatpush1.msra.mxu0 0.0
    %534 = vmatprep.subr.mxu0 0.0
    %535 = vmatpush1.msra.mxu0 0.0
    %536 = vmatprep.subr.mxu0 0.0
    %537 = vmatpush1.msra.mxu0 0.0
    %538 = vmatprep.subr.mxu0 0.0
    %539 = vmatpush1.msra.mxu0 0.0
    %540 = vmatprep.subr.mxu0 0.0
    %541 = vmatpush1.msra.mxu0 0.0
    %542 = vmatprep.subr.mxu0 0.0
    %543 = vmatpush1.msra.mxu0 0.0
    %544 = vmatprep.subr.mxu0 0.0
    %545 = vmatpush1.msra.mxu0 0.0
    %546 = vmatprep.subr.mxu0 0.0
    %547 = vmatpush1.msra.mxu0 0.0
    %548 = vmatprep.subr.mxu0 0.0
    %549 = vmatpush1.msra.mxu0 0.0
    %550 = vmatprep.subr.mxu0 0.0
    %551 = vmatpush1.msra.mxu0 0.0
    %552 = vmatprep.subr.mxu0 0.0
    %553 = vmatpush1.msra.mxu0 0.0
    %554 = vmatprep.subr.mxu0 0.0
    %555 = vmatpush1.msra.mxu0 0.0
    %556 = vmatprep.subr.mxu0 0.0
    %557 = vmatpush1.msra.mxu0 0.0
    %558 = vmatprep.subr.mxu0 0.0
    %559 = vmatpush1.msra.mxu0 0.0
    %560 = vmatprep.subr.mxu0 0.0
    %561 = vmatpush1.msra.mxu0 0.0
    %562 = vmatprep.subr.mxu0 0.0
    %563 = vmatpush1.msra.mxu0 0.0
    %564 = vmatprep.subr.mxu0 0.0
    %565 = vmatpush1.msra.mxu0 0.0
    %566 = vmatprep.subr.mxu0 0.0
    %567 = vmatpush1.msra.mxu0 0.0
    %568 = vmatprep.subr.mxu0 0.0
    %569 = vmatpush1.msra.mxu0 0.0
    %570 = vmatprep.subr.mxu0 0.0
    %571 = vmatpush1.msra.mxu0 0.0
    %572 = vmatprep.subr.mxu0 0.0
    %573 = vmatpush1.msra.mxu0 0.0
    %574 = vmatprep.subr.mxu0 0.0
    %575 = vmatpush1.msra.mxu0 0.0
    %576 = vmatprep.subr.mxu0 0.0
    %577 = vmatpush1.msra.mxu0 0.0
    %578 = vmatprep.subr.mxu0 0.0
    %579 = vmatpush1.msra.mxu0 0.0
    %580 = vmatprep.subr.mxu0 0.0
    %581 = vmatpush1.msra.mxu0 0.0
    %582 = vmatprep.subr.mxu0 0.0
    %583 = vmatpush1.msra.mxu0 0.0
    %584 = vmatprep.mubr.f32.mxu0 0.0
    %585 = vmatmul.mubr.f32.gmra.mrb[0].mxu0 %v515
    %v586 = vpop.f32.mrb[0].mxu0
    %v587 = vadd.f32 %v513, %v586
    %v588 = vpop.f32.mrb[0].mxu0
    %589 = vmatprep.mubr.f32.mxu0 0.0
    %590 = vmatmul.mubr.f32.gmra.mrb[0].mxu0 %v518
    %v591 = vpop.f32.mrb[0].mxu0
    %v592 = vadd.f32 %v513, %v591
    %v593 = vpop.f32.mrb[0].mxu0
    %594 = vdwg.mxu0
    %595 = vst [vmem:[#allocation7] sm:$0xff] %v587
    %596 = vst [vmem:[#allocation7 + $0x8] sm:$0xff] %v592
    // Predicated region
    $region26: #{tpu_custom_call.1} parent=1 // pred_check
      _
    $region27: #{tpu_custom_call.1} parent=1 // pred_check_branch
      %598 = sbr.rel (0) target = $region29
    $region28: #{tpu_custom_call.1} parent=1 // pred_region
      %s600 = ssub.s32 256, 256
      %601 = vsyncadd [#allocation4], %s600
      %s602 = sshll.u32 [#allocation7], 4
      %s603 = int_to_ptr.vmem [resolvable:$true] %s602
      %608 = dma.vmem_to_hbm [thread:$0]  %s603, 256, %s4, [#allocation4], 128, 128, 8
    $region29: #{tpu_custom_call.1} parent=1 // pred_fallthru
      _
    // Predicated region
    $region30: #{tpu_custom_call.1} parent=1 // pred_check
      _
    $region31: #{tpu_custom_call.1} parent=1 // pred_check_branch
      %610 = sbr.rel (0) target = $region33
    $region32: #{tpu_custom_call.1} parent=1 // pred_region
      %611 = dma.done [#allocation4], 256
    $region33: #{tpu_custom_call.1} parent=1 // pred_fallthru
      _
    %612 = vsyncpa [#allocation3], 1
    %613 = vsyncpa [#allocation4], 1
    %614 = vsyncpa [#allocation5], 1

</llo_original>
